<compile_context>
chip_gen: v7x
topology: tpu7x:2x2x1
jax: 0.10.0
libtpu: 0.0.40
codegen_flags: <defaults>
</compile_context>

<pallas_src>
from functools import partial

import numpy as np
import jax
import jax.numpy as jnp
from jax.experimental import pallas as pl
from jax.experimental.pallas import tpu as pltpu


# ----------------------------------------------------------------------------
# Weight construction (mirrors the PyTorch __init__ logic, plain numpy glue)
# ----------------------------------------------------------------------------
def make_forward_weights(z_vector: np.ndarray) -> np.ndarray:
    z = np.asarray(z_vector, dtype=np.float32)
    n = z.shape[0]
    dz_shift1 = z[1:] - z[:-1]
    dz_shift2 = z[2:] - z[:-2]
    dz_m1_list = np.concatenate([np.zeros(1, np.float32), dz_shift1])
    dz_m2_list = np.concatenate([np.zeros(2, np.float32), dz_shift2])
    w = np.zeros((n, 3), dtype=np.float32)
    w[0] = [0.0, 0.0, 0.0]
    w[1] = [0.0, -1.0 / dz_m1_list[1], 1.0 / dz_m1_list[1]]
    for i in range(2, n):
        dz_m1 = dz_m1_list[i]
        dz_m2 = dz_m2_list[i] - dz_m1
        factor = -dz_m1 * (dz_m1 + dz_m2) / dz_m2
        w[i] = [
            -factor / (dz_m2 + dz_m1) ** 2,
            factor / dz_m1 ** 2,
            factor / (dz_m2 + dz_m1) ** 2 - factor / dz_m1 ** 2,
        ]
    return w


def make_backward_weights(z_vector: np.ndarray) -> np.ndarray:
    z = np.asarray(z_vector, dtype=np.float32)
    n = z.shape[0]
    dz_shift1 = z[1:] - z[:-1]
    dz_shift2 = z[2:] - z[:-2]
    dz_p1_list = np.concatenate([dz_shift1, np.zeros(1, np.float32)])
    dz_p2_list = np.concatenate([dz_shift2, np.zeros(2, np.float32)])
    w = np.zeros((n, 3), dtype=np.float32)
    w[-1] = [0.0, 0.0, 0.0]
    w[-2] = [-1.0 / dz_p1_list[-2], 1.0 / dz_p1_list[-2], 0.0]
    for i in range(0, n - 2):
        dz_p1 = dz_p1_list[i]
        dz_p2 = dz_p2_list[i] - dz_p1
        factor = dz_p1 * (dz_p1 + dz_p2) / dz_p2
        w[i] = [
            factor / (dz_p1 + dz_p2) ** 2 - factor / dz_p1 ** 2,
            factor / dz_p1 ** 2,
            -factor / (dz_p1 + dz_p2) ** 2,
        ]
    return w


def pack_weights(w_fwd: np.ndarray, w_bwd: np.ndarray) -> jnp.ndarray:
    """Pack (Z,3) fwd + (Z,3) bwd weights into one lane-dense (8, Z) array."""
    z = w_fwd.shape[0]
    packed = np.zeros((8, z), dtype=np.float32)
    packed[0:3] = np.asarray(w_fwd, np.float32).T   # forward taps: u_m2, u_m1, u
    packed[3:6] = np.asarray(w_bwd, np.float32).T   # backward taps: u, u_p1, u_p2
    return jnp.asarray(packed)


# ----------------------------------------------------------------------------
# Pallas kernel: fused forward/backward one-sided differences + upwind select
# ----------------------------------------------------------------------------
def upwind_kernel(u_ref, sign_ref, w_ref, o_ref):
    u = u_ref[...]        # (TILE_V, Z)
    s = sign_ref[...]     # (TILE_V, Z)
    z = u.shape[1]

    # Periodic rolls along the z (lane) axis via XLU lane rotation.
    # torch.roll(u, +k, 1): out[:, i] = u[:, i-k]  -> pltpu.roll(u, k)
    # torch.roll(u, -k, 1): out[:, i] = u[:, i+k]  -> pltpu.roll(u, z-k)
    u_m1 = pltpu.roll(u, 1, axis=1)
    u_m2 = pltpu.roll(u, 2, axis=1)
    u_p1 = pltpu.roll(u, z - 1, axis=1)
    u_p2 = pltpu.roll(u, z - 2, axis=1)

    # Forward-difference: einsum('vzt,zt->vz', [u_m2, u_m1, u], w_fwd)
    u_forward = (w_ref[0:1, :] * u_m2
                 + w_ref[1:2, :] * u_m1
                 + w_ref[2:3, :] * u)

    # Backward-difference: einsum('vzt,zt->vz', [u, u_p1, u_p2], w_bwd)
    u_backward = (w_ref[3:4, :] * u
                  + w_ref[4:5, :] * u_p1
                  + w_ref[5:6, :] * u_p2)

    # (u_sign >= 0) * u_forward + (u_sign < 0) * u_backward
    o_ref[...] = jnp.where(s >= 0.0, u_forward, u_backward)


@partial(jax.jit, static_argnames=("tile_v",))
def _upwind_call(u, u_sign, w_packed, tile_v):
    V, Z = u.shape
    grid = (pl.cdiv(V, tile_v),)
    return pl.pallas_call(
        upwind_kernel,
        out_shape=jax.ShapeDtypeStruct((V, Z), jnp.float32),
        grid=grid,
        in_specs=[
            pl.BlockSpec((tile_v, Z), lambda i: (i, 0)),   # u
            pl.BlockSpec((tile_v, Z), lambda i: (i, 0)),   # u_sign
            pl.BlockSpec((8, Z), lambda i: (0, 0)),        # packed weights (resident)
        ],
        out_specs=pl.BlockSpec((tile_v, Z), lambda i: (i, 0)),
        compiler_params=pltpu.CompilerParams(
            dimension_semantics=("parallel",)),             # megacore sharding on v7x
    )(u, u_sign, w_packed)


def make_order2_diff1_unstructure_upwind(z_vector: np.ndarray, max_tile_v: int = 2048):
    """Builds the upwind operator: weights packed/transposed once at setup.

    Returns apply(u, u_sign) -> (V, Z) f32.  The grid tiles V (Z stays whole in
    every block because the periodic rolls need the full z extent).
    max_tile_v=2048 keeps pipeline buffers ~6 MiB for Z=128 -- safe on v7x's
    64 MiB VMEM; v5e/v6e could go larger but this already sits near roofline.
    """
    w_packed = pack_weights(make_forward_weights(z_vector),
                            make_backward_weights(z_vector))

    def apply(u, u_sign):
        V = u.shape[0]
        tile_v = V if V <= max_tile_v else max_tile_v   # full-V tile or 8-aligned tile
        return _upwind_call(jnp.asarray(u, jnp.float32),
                            jnp.asarray(u_sign, jnp.float32),
                            w_packed, tile_v)

    return apply


# ----------------------------------------------------------------------------
# Pure-JAX reference (mirrors the PyTorch forward) for a sanity check
# ----------------------------------------------------------------------------
def reference(u, u_sign, w_fwd, w_bwd):
    u_m1 = jnp.roll(u, 1, axis=1)
    u_m2 = jnp.roll(u, 2, axis=1)
    u_p1 = jnp.roll(u, -1, axis=1)
    u_p2 = jnp.roll(u, -2, axis=1)
    u_pad_f = jnp.stack([u_m2, u_m1, u], axis=-1)
    u_pad_b = jnp.stack([u, u_p1, u_p2], axis=-1)
    uf = jnp.einsum('vzt,zt->vz', u_pad_f, w_fwd)
    ub = jnp.einsum('vzt,zt->vz', u_pad_b, w_bwd)
    return (u_sign >= 0.0) * uf + (u_sign < 0.0) * ub


if __name__ == "__main__":
    V, Z = 8, 128

    # Deterministic, strictly increasing unstructured grid.
    key = jax.random.PRNGKey(0)
    k_dz, k_u, k_sign = jax.random.split(key, 3)
    dz = 0.5 + jax.random.uniform(k_dz, (Z,), dtype=jnp.float32)
    z_vector = np.cumsum(np.asarray(dz, np.float32)).astype(np.float32)

    upwind = make_order2_diff1_unstructure_upwind(z_vector)

    u = jax.random.normal(k_u, (V, Z), dtype=jnp.float32)
    u_sign = jax.random.normal(k_sign, (V, Z), dtype=jnp.float32)

    out = jax.block_until_ready(upwind(u, u_sign))

    w_fwd = jnp.asarray(make_forward_weights(z_vector))
    w_bwd = jnp.asarray(make_backward_weights(z_vector))
    ref = reference(u, u_sign, w_fwd, w_bwd)
    np.testing.assert_allclose(np.asarray(out), np.asarray(ref),
                               rtol=1e-5, atol=1e-5)

    print("KERNEL_OK")
</pallas_src>

<mosaic_0001>
module attributes {stable_mosaic.version = 11 : i64} {
  func.func @upwind_kernel(%arg0: i32, %arg1: memref<8x128xf32, #tpu.memory_space<vmem>>, %arg2: memref<8x128xf32, #tpu.memory_space<vmem>>, %arg3: memref<8x128xf32, #tpu.memory_space<vmem>>, %arg4: memref<8x128xf32, #tpu.memory_space<vmem>>) attributes {dimension_semantics = [#tpu.dimension_semantics<parallel>], iteration_bounds = array<i64: 1>, scalar_prefetch = 0 : i64, scratch_operands = 0 : i64, tpu.core_type = #tpu.core_type<tc>, window_params = [{transform_indices = @transform_0, window_bounds = array<i64: 8, 128>}, {transform_indices = @transform_1, window_bounds = array<i64: 8, 128>}, {pipeline_mode = #tpu.pipeline_mode<synchronous>, transform_indices = @transform_2, window_bounds = array<i64: 8, 128>}, {transform_indices = @transform_3, window_bounds = array<i64: 8, 128>}]} {
    %c0 = arith.constant 0 : index
    %c0_0 = arith.constant 0 : index
    %0 = vector.load %arg1[%c0, %c0_0] : memref<8x128xf32, #tpu.memory_space<vmem>>, vector<8x128xf32>
    %c0_1 = arith.constant 0 : index
    %c0_2 = arith.constant 0 : index
    %1 = vector.load %arg2[%c0_1, %c0_2] : memref<8x128xf32, #tpu.memory_space<vmem>>, vector<8x128xf32>
    %c1_i32 = arith.constant 1 : i32
    %2 = tpu.dynamic_rotate %0 by %c1_i32 dim 1 : vector<8x128xf32>, i32 -> vector<8x128xf32>
    %c2_i32 = arith.constant 2 : i32
    %3 = tpu.dynamic_rotate %0 by %c2_i32 dim 1 : vector<8x128xf32>, i32 -> vector<8x128xf32>
    %c127_i32 = arith.constant 127 : i32
    %4 = tpu.dynamic_rotate %0 by %c127_i32 dim 1 : vector<8x128xf32>, i32 -> vector<8x128xf32>
    %c126_i32 = arith.constant 126 : i32
    %5 = tpu.dynamic_rotate %0 by %c126_i32 dim 1 : vector<8x128xf32>, i32 -> vector<8x128xf32>
    %c0_3 = arith.constant 0 : index
    %c0_4 = arith.constant 0 : index
    %6 = vector.load %arg3[%c0_3, %c0_4] : memref<8x128xf32, #tpu.memory_space<vmem>>, vector<1x128xf32>
    %7 = vector.broadcast %6 : vector<1x128xf32> to vector<8x128xf32>
    %8 = arith.mulf %7, %3 : vector<8x128xf32>
    %c1 = arith.constant 1 : index
    %c0_5 = arith.constant 0 : index
    %9 = vector.load %arg3[%c1, %c0_5] : memref<8x128xf32, #tpu.memory_space<vmem>>, vector<1x128xf32>
    %10 = vector.broadcast %9 : vector<1x128xf32> to vector<8x128xf32>
    %11 = arith.mulf %10, %2 : vector<8x128xf32>
    %12 = arith.addf %8, %11 : vector<8x128xf32>
    %c2 = arith.constant 2 : index
    %c0_6 = arith.constant 0 : index
    %13 = vector.load %arg3[%c2, %c0_6] : memref<8x128xf32, #tpu.memory_space<vmem>>, vector<1x128xf32>
    %14 = vector.broadcast %13 : vector<1x128xf32> to vector<8x128xf32>
    %15 = arith.mulf %14, %0 : vector<8x128xf32>
    %16 = arith.addf %12, %15 : vector<8x128xf32>
    %c3 = arith.constant 3 : index
    %c0_7 = arith.constant 0 : index
    %17 = vector.load %arg3[%c3, %c0_7] : memref<8x128xf32, #tpu.memory_space<vmem>>, vector<1x128xf32>
    %18 = vector.broadcast %17 : vector<1x128xf32> to vector<8x128xf32>
    %19 = arith.mulf %18, %0 : vector<8x128xf32>
    %c4 = arith.constant 4 : index
    %c0_8 = arith.constant 0 : index
    %20 = vector.load %arg3[%c4, %c0_8] : memref<8x128xf32, #tpu.memory_space<vmem>>, vector<1x128xf32>
    %21 = vector.broadcast %20 : vector<1x128xf32> to vector<8x128xf32>
    %22 = arith.mulf %21, %4 : vector<8x128xf32>
    %23 = arith.addf %19, %22 : vector<8x128xf32>
    %c5 = arith.constant 5 : index
    %c0_9 = arith.constant 0 : index
    %24 = vector.load %arg3[%c5, %c0_9] : memref<8x128xf32, #tpu.memory_space<vmem>>, vector<1x128xf32>
    %25 = vector.broadcast %24 : vector<1x128xf32> to vector<8x128xf32>
    %26 = arith.mulf %25, %5 : vector<8x128xf32>
    %27 = arith.addf %23, %26 : vector<8x128xf32>
    %cst = arith.constant 0.000000e+00 : f32
    %28 = vector.broadcast %cst : f32 to vector<8x128xf32>
    %29 = arith.cmpf oge, %1, %28 : vector<8x128xf32>
    %30 = arith.select %29, %16, %27 : vector<8x128xi1>, vector<8x128xf32>
    %c0_10 = arith.constant 0 : index
    %c0_11 = arith.constant 0 : index
    %31 = vector.load %arg4[%c0_10, %c0_11] : memref<8x128xf32, #tpu.memory_space<vmem>>, vector<8x128xf32>
    tpu.vector_store %arg4[%c0_10, %c0_11], %30 {strides = array<i32>} : memref<8x128xf32, #tpu.memory_space<vmem>>, vector<8x128xf32>,
    return
  }
  func.func @transform_0(%arg0: i32) -> (i32, i32) {
    %c0_i32 = arith.constant 0 : i32
    %c0_i32_0 = arith.constant 0 : i32
    return %arg0, %c0_i32 : i32, i32
  }
  func.func @transform_1(%arg0: i32) -> (i32, i32) {
    %c0_i32 = arith.constant 0 : i32
    %c0_i32_0 = arith.constant 0 : i32
    return %arg0, %c0_i32 : i32, i32
  }
  func.func @transform_2(%arg0: i32) -> (i32, i32) {
    %c0_i32 = arith.constant 0 : i32
    %c0_i32_0 = arith.constant 0 : i32
    %c0_i32_1 = arith.constant 0 : i32
    return %c0_i32, %c0_i32_0 : i32, i32
  }
  func.func @transform_3(%arg0: i32) -> (i32, i32) {
    %c0_i32 = arith.constant 0 : i32
    %c0_i32_0 = arith.constant 0 : i32
    return %arg0, %c0_i32 : i32, i32
  }
}

</mosaic_0001>

<llo_original>
// kernel: _upwind_call.1
$region0: #{_upwind_call.1}
  #allocation0 [shape = 'u32[]', space=smem, size = 0x4, offset = 0x4, fixed_abs, tag = 'smem constant byte address 0x4 - core index']
  #allocation1 [shape = 'u32[144,128]{1,0:T(1,128)}', space=vmem, size = 0x12000, scoped, tag = 'internal scratch']
  %s0 = inlined_call_operand.hbm [shape: f32[8,128], index: 0, kind: input, shape index: {}]
  %s1 = inlined_call_operand.hbm [shape: f32[8,128], index: 1, kind: input, shape index: {}]
  %s2 = inlined_call_operand.hbm [shape: f32[8,128], index: 2, kind: input, shape index: {}]
  %s3 = inlined_call_operand.hbm [shape: f32[8,128], index: 3, kind: output, shape index: {}]
  %s4 = sld [smem:[#allocation0]]
  $region34: #{_upwind_call.1} parent=0
    _
  %s6 = ssub.s32 1, %s4
  %s7 = scalar_select 0, %s6, %s4
  $region1: #{_upwind_call.1} parent=0
    #allocation2 [shape = 'u8[4096]{0}', space=vmem, size = 0x1000, scoped, tag = 'input window, operand 0, single buffered']
    #allocation3 [shape = 's32[1]{0}', space=sflag, size = 0x4, scoped, tag = 'scoped memory for _upwind_call.1']
    #allocation4 [shape = 's32[1]{0}', space=sflag, size = 0x4, scoped, tag = 'scoped memory for _upwind_call.1']
    #allocation5 [shape = 'u8[4096]{0}', space=vmem, size = 0x1000, scoped, tag = 'input window, operand 1, single buffered']
    #allocation6 [shape = 's32[1]{0}', space=sflag, size = 0x4, scoped, tag = 'scoped memory for _upwind_call.1']
    #allocation7 [shape = 'u8[4096]{0}', space=vmem, size = 0x1000, scoped, tag = 'input window, operand 2, single buffered']
    #allocation8 [shape = 'u8[4096]{0}', space=vmem, size = 0x1000, scoped, tag = 'output window, operand 0, single buffered']
    %8 = vsyncpa [#allocation3], 0
    %9 = vsyncpa [#allocation6], 0
    %10 = vsyncpa [#allocation4], 0
    // Predicated region
    $region2: #{_upwind_call.1} parent=1 // pred_check
      _
    $region3: #{_upwind_call.1} parent=1 // pred_check_branch
      %12 = sbr.rel (0) target = $region5
    $region4: #{_upwind_call.1} parent=1 // pred_region
      %s14 = ssub.s32 128, 128
      %15 = vsyncadd [#allocation3], %s14
      %s17 = sshll.u32 [#allocation2], 4
      %s18 = int_to_ptr.vmem [resolvable:$true] %s17
      %20 = dma.hbm_to_vmem [thread:$0]  %s0, 128, %s18, [#allocation3]
    $region5: #{_upwind_call.1} parent=1 // pred_fallthru
      _
    // Predicated region
    $region6: #{_upwind_call.1} parent=1 // pred_check
      _
    $region7: #{_upwind_call.1} parent=1 // pred_check_branch
      %22 = sbr.rel (0) target = $region9
    $region8: #{_upwind_call.1} parent=1 // pred_region
      %s24 = ssub.s32 128, 128
      %25 = vsyncadd [#allocation6], %s24
      %s27 = sshll.u32 [#allocation5], 4
      %s28 = int_to_ptr.vmem [resolvable:$true] %s27
      %30 = dma.hbm_to_vmem [thread:$0]  %s1, 128, %s28, [#allocation6]
    $region9: #{_upwind_call.1} parent=1 // pred_fallthru
      _
    // Predicated region
    $region10: #{_upwind_call.1} parent=1 // pred_check
      _
    $region11: #{_upwind_call.1} parent=1 // pred_check_branch
      %32 = sbr.rel (0) target = $region13
    $region12: #{_upwind_call.1} parent=1 // pred_region
      %s34 = ssub.s32 128, 128
      %35 = vsyncadd [#allocation6], %s34
      %s37 = sshll.u32 [#allocation7], 4
      %s38 = int_to_ptr.vmem [resolvable:$true] %s37
      %40 = dma.hbm_to_vmem [thread:$0]  %s2, 128, %s38, [#allocation6]
    $region13: #{_upwind_call.1} parent=1 // pred_fallthru
      _
    // Predicated region
    $region14: #{_upwind_call.1} parent=1 // pred_check
      _
    $region15: #{_upwind_call.1} parent=1 // pred_check_branch
      %42 = sbr.rel (0) target = $region17
    $region16: #{_upwind_call.1} parent=1 // pred_region
      %43 = dma.done [#allocation3], 128
    $region17: #{_upwind_call.1} parent=1 // pred_fallthru
      _
    // Predicated region
    $region18: #{_upwind_call.1} parent=1 // pred_check
      _
    $region19: #{_upwind_call.1} parent=1 // pred_check_branch
      %45 = sbr.rel (0) target = $region21
    $region20: #{_upwind_call.1} parent=1 // pred_region
      %46 = dma.done [#allocation6], 128
    $region21: #{_upwind_call.1} parent=1 // pred_fallthru
      _
    // Predicated region
    $region22: #{_upwind_call.1} parent=1 // pred_check
      _
    $region23: #{_upwind_call.1} parent=1 // pred_check_branch
      %48 = sbr.rel (0) target = $region25
    $region24: #{_upwind_call.1} parent=1 // pred_region
      %49 = dma.done [#allocation6], 128
    $region25: #{_upwind_call.1} parent=1 // pred_fallthru
      _
    %v50 = vld [vmem:[#allocation2] sm:$0xff]
    %v51 = vld [vmem:[#allocation5] sm:$0xff]
    %52 = vrot.lane.b32.xlu0 %v50, 1
    %v53 = vpop.permute.xlu0 %52
    %54 = vrot.lane.b32.xlu0 %v50, 2
    %v55 = vpop.permute.xlu0 %54
    %56 = vrot.lane.b32.xlu0 %v50, 127
    %v57 = vpop.permute.xlu0 %56
    %58 = vrot.lane.b32.xlu0 %v50, 126
    %v59 = vpop.permute.xlu0 %58
    %v60 = vld [vmem:[#allocation7] sm:$0x1]
    %v61 = vlaneseq
    %v62 = vshrl.u32 %v61, 7
    %v63 = vsub.s32 0, %v62
    %v64 = vrot.slane %v60, %v63
    %v65 = vmul.f32 %v64, %v55
    %v66 = vld [vmem:[#allocation7 + $0x1] sm:$0x1]
    %v67 = vlaneseq
    %v68 = vshrl.u32 %v67, 7
    %v69 = vsub.s32 0, %v68
    %v70 = vrot.slane %v66, %v69
    %v71 = vmul.f32 %v70, %v53
    %v72 = vadd.f32 %v65, %v71
    %v73 = vld [vmem:[#allocation7 + $0x2] sm:$0x1]
    %v74 = vlaneseq
    %v75 = vshrl.u32 %v74, 7
    %v76 = vsub.s32 0, %v75
    %v77 = vrot.slane %v73, %v76
    %v78 = vmul.f32 %v77, %v50
    %v79 = vadd.f32 %v72, %v78
    %v80 = vld [vmem:[#allocation7 + $0x3] sm:$0x1]
    %v81 = vlaneseq
    %v82 = vshrl.u32 %v81, 7
    %v83 = vsub.s32 0, %v82
    %v84 = vrot.slane %v80, %v83
    %v85 = vmul.f32 %v84, %v50
    %v86 = vld [vmem:[#allocation7 + $0x4] sm:$0x1]
    %v87 = vlaneseq
    %v88 = vshrl.u32 %v87, 7
    %v89 = vsub.s32 0, %v88
    %v90 = vrot.slane %v86, %v89
    %v91 = vmul.f32 %v90, %v57
    %v92 = vadd.f32 %v85, %v91
    %v93 = vld [vmem:[#allocation7 + $0x5] sm:$0x1]
    %v94 = vlaneseq
    %v95 = vshrl.u32 %v94, 7
    %v96 = vsub.s32 0, %v95
    %v97 = vrot.slane %v93, %v96
    %v98 = vmul.f32 %v97, %v59
    %v99 = vadd.f32 %v92, %v98
    %vm100 = vcmp.ge.f32.partialorder %v51, 0.0
    %v101 = vsel %vm100, %v79, %v99
    %102 = vst [vmem:[#allocation8] sm:$0xff] %v101
    // Predicated region
    $region26: #{_upwind_call.1} parent=1 // pred_check
      _
    $region27: #{_upwind_call.1} parent=1 // pred_check_branch
      %104 = sbr.rel (0) target = $region29
    $region28: #{_upwind_call.1} parent=1 // pred_region
      %s106 = ssub.s32 128, 128
      %107 = vsyncadd [#allocation4], %s106
      %s109 = sshll.u32 [#allocation8], 4
      %s110 = int_to_ptr.vmem [resolvable:$true] %s109
      %112 = dma.vmem_to_hbm [thread:$0]  %s110, 128, %s3, [#allocation4]
    $region29: #{_upwind_call.1} parent=1 // pred_fallthru
      _
    // Predicated region
    $region30: #{_upwind_call.1} parent=1 // pred_check
      _
    $region31: #{_upwind_call.1} parent=1 // pred_check_branch
      %114 = sbr.rel (0) target = $region33
    $region32: #{_upwind_call.1} parent=1 // pred_region
      %115 = dma.done [#allocation4], 128
    $region33: #{_upwind_call.1} parent=1 // pred_fallthru
      _
    %116 = vsyncpa [#allocation3], 1
    %117 = vsyncpa [#allocation6], 1
    %118 = vsyncpa [#allocation4], 1

</llo_original>
